<compile_context>
chip_gen: v5e
topology: v5e:2x2
jax: 0.10.0
libtpu: 0.0.40
codegen_flags: <defaults>
</compile_context>

<pallas_src>
import functools
import math

import jax
import jax.numpy as jnp
from jax.experimental import pallas as pl
from jax.experimental.pallas import tpu as pltpu


def _pe_add_kernel(x_ref, pe_ref, o_ref):
    # x_ref: (tS, B, D)   pe_ref: (tS, D)   o_ref: (tS, B, D)
    x = x_ref[...]
    pe = pe_ref[...][:, None, :]          # (tS, 1, D) -> broadcasts over batch (free on VPU)
    o_ref[...] = (x + pe.astype(x.dtype)).astype(o_ref.dtype)


def _pe_add_dropout_kernel(x_ref, pe_ref, bits_ref, o_ref, *, dropout_p):
    # x_ref: (tS, B, D)   pe_ref: (tS, D)   bits_ref: (tS, B, D) uint32   o_ref: (tS, B, D)
    x = x_ref[...]
    pe = pe_ref[...][:, None, :]          # (tS, 1, D)
    y = x + pe.astype(x.dtype)            # compute in the input dtype (bf16-friendly)

    # Inverted dropout (torch.nn.Dropout semantics; RNG stream differs from torch).
    # Direct integer threshold on uniform uint32 bits: keep with prob (1 - p).
    threshold = jnp.uint32(min(int(round(dropout_p * 4294967296.0)), 4294967295))
    keep = bits_ref[...] >= threshold
    inv_keep = jnp.asarray(1.0 / (1.0 - dropout_p), dtype=y.dtype)
    y = jnp.where(keep, y * inv_keep, jnp.zeros((), dtype=y.dtype))

    o_ref[...] = y.astype(o_ref.dtype)


def make_pos_encoding(dim_model, max_len, dtype=jnp.float32):
    """Build the (max_len, 1, dim_model) positional-encoding buffer exactly like the torch __init__."""
    positions = jnp.arange(0, max_len, dtype=jnp.float32).reshape(-1, 1)            # (max_len, 1)
    division_term = jnp.exp(
        jnp.arange(0, dim_model, 2, dtype=jnp.float32) * (-math.log(10000.0) / dim_model)
    )                                                                                # (D//2,)
    angles = positions * division_term                                               # (max_len, D//2)
    pe = jnp.zeros((max_len, dim_model), dtype=jnp.float32)
    pe = pe.at[:, 0::2].set(jnp.sin(angles))
    pe = pe.at[:, 1::2].set(jnp.cos(angles))
    pe = pe[:, None, :]                                                              # (max_len, 1, D)
    return pe.astype(dtype)


def positional_encoding_forward(token_embedding, pos_encoding, *, dropout_p,
                                rng_key=None, training=True):
    """token_embedding: (S, B, D).  pos_encoding: (max_len, 1, D)."""
    S, B, D = token_embedding.shape
    # Squeeze the size-1 batch dim of pe and slice to the current sequence length (glue).
    pe_2d = pos_encoding[:S, 0, :].astype(token_embedding.dtype)                     # (S, D)

    apply_dropout = bool(training) and float(dropout_p) > 0.0

    # Tile over the sequence axis. Target <=512 KiB per x tile so the double-buffered
    # working set (x + pe + bits + out, x2 buffers) stays well under every generation's
    # scoped VMEM (16 MiB on v5e, 32 MiB on v6e/v7x).  The last two block dims (B, D) are
    # full-extent, so the (8,128) divisibility rule does not constrain them; the pe block's
    # sublane dim (tS) is kept a multiple of 8 (or the full S).
    itemsize = jnp.dtype(token_embedding.dtype).itemsize
    row_bytes = max(B * D * itemsize, 1)
    tS = max(1, min(S, (512 * 1024) // row_bytes))
    if S > 8 and tS > 8:
        tS = (tS // 8) * 8
    grid = (pl.cdiv(S, tS),)

    x_spec = pl.BlockSpec((tS, B, D), lambda i: (i, 0, 0))
    pe_spec = pl.BlockSpec((tS, D), lambda i: (i, 0))
    out_spec = pl.BlockSpec((tS, B, D), lambda i: (i, 0, 0))

    if apply_dropout:
        if rng_key is None:
            rng_key = jax.random.PRNGKey(0)
        # Uniform uint32 bits, generated outside the kernel (portable: TPU + interpret mode).
        bits = jax.random.bits(rng_key, (S, B, D), dtype=jnp.uint32)
        kernel = functools.partial(_pe_add_dropout_kernel, dropout_p=float(dropout_p))
        in_specs = [x_spec, pe_spec, pl.BlockSpec((tS, B, D), lambda i: (i, 0, 0))]
        args = (token_embedding, pe_2d, bits)
    else:
        kernel = _pe_add_kernel
        in_specs = [x_spec, pe_spec]
        args = (token_embedding, pe_2d)

    return pl.pallas_call(
        kernel,
        out_shape=jax.ShapeDtypeStruct((S, B, D), token_embedding.dtype),
        grid=grid,
        in_specs=in_specs,
        out_specs=out_spec,
        compiler_params=pltpu.CompilerParams(
            dimension_semantics=("parallel",),   # no cross-tile dependency; uses both v7x TCs
        ),
    )(*args)


if __name__ == "__main__":
    # Module hyperparameters (deterministic, in-script).
    dim_model = 32
    max_len = 16
    dropout_p = 0.1

    # Input: (seq_len, batch, dim_model), seq-first like the PyTorch forward.
    seq_len, batch = 8, 2
    key = jax.random.PRNGKey(0)
    x_key, drop_key = jax.random.split(key)
    x = jax.random.normal(x_key, (seq_len, batch, dim_model), dtype=jnp.float32)

    pos_encoding = make_pos_encoding(dim_model, max_len)

    # Training-mode forward (dropout active, deterministic given drop_key).
    out_train = positional_encoding_forward(
        x, pos_encoding, dropout_p=dropout_p, rng_key=drop_key, training=True
    )
    out_train = jax.block_until_ready(out_train)

    # Eval-mode forward (dropout is identity) — check against a pure-JAX reference.
    out_eval = positional_encoding_forward(
        x, pos_encoding, dropout_p=dropout_p, rng_key=drop_key, training=False
    )
    out_eval = jax.block_until_ready(out_eval)

    ref_eval = x + pos_encoding[:seq_len]
    assert out_train.shape == (seq_len, batch, dim_model)
    assert jnp.allclose(out_eval, ref_eval, atol=1e-6, rtol=1e-6)

    # Training-mode sanity: every output element is either 0 (dropped) or (x+pe)/(1-p) (kept).
    expected_scaled = ref_eval / (1.0 - dropout_p)
    ok = jnp.where(
        out_train == 0.0,
        True,
        jnp.isclose(out_train, expected_scaled, atol=1e-5, rtol=1e-5),
    )
    assert bool(ok.all())

    print("KERNEL_OK")
</pallas_src>

<mosaic_0001>
module attributes {stable_mosaic.version = 11 : i64} {
  func.func @_pe_add_dropout_kernel(%arg0: i32, %arg1: memref<8x2x32xf32, #tpu.memory_space<vmem>>, %arg2: memref<8x32xf32, #tpu.memory_space<vmem>>, %arg3: memref<8x2x32xi32, #tpu.memory_space<vmem>>, %arg4: memref<8x2x32xf32, #tpu.memory_space<vmem>>) attributes {dimension_semantics = [#tpu.dimension_semantics<parallel>], iteration_bounds = array<i64: 1>, scalar_prefetch = 0 : i64, scratch_operands = 0 : i64, tpu.core_type = #tpu.core_type<tc>, window_params = [{transform_indices = @transform_0, window_bounds = array<i64: 8, 2, 32>}, {transform_indices = @transform_1, window_bounds = array<i64: 8, 32>}, {transform_indices = @transform_2, window_bounds = array<i64: 8, 2, 32>}, {transform_indices = @transform_3, window_bounds = array<i64: 8, 2, 32>}]} {
    %c0 = arith.constant 0 : index
    %c0_0 = arith.constant 0 : index
    %c0_1 = arith.constant 0 : index
    %0 = vector.load %arg1[%c0, %c0_0, %c0_1] : memref<8x2x32xf32, #tpu.memory_space<vmem>>, vector<8x2x32xf32>
    %c0_2 = arith.constant 0 : index
    %c0_3 = arith.constant 0 : index
    %1 = vector.load %arg2[%c0_2, %c0_3] : memref<8x32xf32, #tpu.memory_space<vmem>>, vector<8x32xf32>
    %2 = vector.shape_cast %1 : vector<8x32xf32> to vector<8x1x32xf32>
    %3 = vector.broadcast %2 : vector<8x1x32xf32> to vector<8x2x32xf32>
    %4 = arith.addf %0, %3 : vector<8x2x32xf32>
    %c0_4 = arith.constant 0 : index
    %c0_5 = arith.constant 0 : index
    %c0_6 = arith.constant 0 : index
    %5 = vector.load %arg3[%c0_4, %c0_5, %c0_6] : memref<8x2x32xi32, #tpu.memory_space<vmem>>, vector<8x2x32xi32>
    %c429496730_i32 = arith.constant 429496730 : i32
    %6 = vector.broadcast %c429496730_i32 : i32 to vector<8x2x32xi32>
    %7 = arith.cmpi uge, %5, %6 : vector<8x2x32xi32>
    %cst = arith.constant 1.11111116 : f32
    %8 = vector.broadcast %cst : f32 to vector<8x2x32xf32>
    %9 = arith.mulf %4, %8 : vector<8x2x32xf32>
    %cst_7 = arith.constant 0.000000e+00 : f32
    %10 = vector.broadcast %cst_7 : f32 to vector<8x2x32xf32>
    %11 = arith.select %7, %9, %10 : vector<8x2x32xi1>, vector<8x2x32xf32>
    %c0_8 = arith.constant 0 : index
    %c0_9 = arith.constant 0 : index
    %c0_10 = arith.constant 0 : index
    %12 = vector.load %arg4[%c0_8, %c0_9, %c0_10] : memref<8x2x32xf32, #tpu.memory_space<vmem>>, vector<8x2x32xf32>
    tpu.vector_store %arg4[%c0_8, %c0_9, %c0_10], %11 {strides = array<i32>} : memref<8x2x32xf32, #tpu.memory_space<vmem>>, vector<8x2x32xf32>,
    return
  }
  func.func @transform_0(%arg0: i32) -> (i32, i32, i32) {
    %c0_i32 = arith.constant 0 : i32
    %c0_i32_0 = arith.constant 0 : i32
    %c0_i32_1 = arith.constant 0 : i32
    return %arg0, %c0_i32, %c0_i32_0 : i32, i32, i32
  }
  func.func @transform_1(%arg0: i32) -> (i32, i32) {
    %c0_i32 = arith.constant 0 : i32
    %c0_i32_0 = arith.constant 0 : i32
    return %arg0, %c0_i32 : i32, i32
  }
  func.func @transform_2(%arg0: i32) -> (i32, i32, i32) {
    %c0_i32 = arith.constant 0 : i32
    %c0_i32_0 = arith.constant 0 : i32
    %c0_i32_1 = arith.constant 0 : i32
    return %arg0, %c0_i32, %c0_i32_0 : i32, i32, i32
  }
  func.func @transform_3(%arg0: i32) -> (i32, i32, i32) {
    %c0_i32 = arith.constant 0 : i32
    %c0_i32_0 = arith.constant 0 : i32
    %c0_i32_1 = arith.constant 0 : i32
    return %arg0, %c0_i32, %c0_i32_0 : i32, i32, i32
  }
}

</mosaic_0001>

<llo_original>
// kernel: tpu_custom_call.1
$region0: #{tpu_custom_call.1}
  #allocation0 [shape = 'u32[]', space=smem, size = 0x4, offset = 0x4, fixed_abs, tag = 'smem constant byte address 0x4 - core index']
  #allocation1 [shape = 'u32[72,128]{1,0:T(1,128)}', space=vmem, size = 0x9000, scoped, tag = 'internal scratch']
  %s0 = inlined_call_operand.hbm [shape: f32[8,2,32], index: 0, kind: input, shape index: {}]
  %s1 = inlined_call_operand.hbm [shape: f32[8,32], index: 1, kind: input, shape index: {}]
  %s2 = inlined_call_operand.hbm [shape: u32[8,2,32], index: 2, kind: input, shape index: {}]
  %s3 = inlined_call_operand.hbm [shape: f32[8,2,32], index: 3, kind: output, shape index: {}]
  %s4 = sld [smem:[#allocation0]]
  $region34: #{tpu_custom_call.1} parent=0
    _
  %s6 = ssub.s32 1, %s4
  %s7 = scalar_select 0, %s6, %s4
  $region1: #{tpu_custom_call.1} parent=0
    #allocation2 [shape = 'u8[8192]{0}', space=vmem, size = 0x2000, scoped, tag = 'input window, operand 0, single buffered']
    #allocation3 [shape = 's32[1]{0}', space=sflag, size = 0x4, scoped, tag = 'scoped memory for tpu_custom_call.1']
    #allocation4 [shape = 's32[1]{0}', space=sflag, size = 0x4, scoped, tag = 'scoped memory for tpu_custom_call.1']
    #allocation5 [shape = 'u8[4096]{0}', space=vmem, size = 0x1000, scoped, tag = 'input window, operand 1, single buffered']
    #allocation6 [shape = 's32[1]{0}', space=sflag, size = 0x4, scoped, tag = 'scoped memory for tpu_custom_call.1']
    #allocation7 [shape = 'u8[8192]{0}', space=vmem, size = 0x2000, scoped, tag = 'input window, operand 2, single buffered']
    #allocation8 [shape = 'u8[8192]{0}', space=vmem, size = 0x2000, scoped, tag = 'output window, operand 0, single buffered']
    %8 = vsyncpa [#allocation3], 0
    %9 = vsyncpa [#allocation6], 0
    %10 = vsyncpa [#allocation4], 0
    // Predicated region
    $region2: #{tpu_custom_call.1} parent=1 // pred_check
      _
    $region3: #{tpu_custom_call.1} parent=1 // pred_check_branch
      %12 = sbr.rel (0) target = $region5
    $region4: #{tpu_custom_call.1} parent=1 // pred_region
      %14 = vsyncadd [#allocation3], 0
      %s15 = sshll.u32 %s0, 4
      %s16 = int_to_ptr.hbm [resolvable:$true] %s15
      %s17 = sshll.u32 [#allocation2], 4
      %s18 = int_to_ptr.vmem [resolvable:$true] %s17
      %23 = dma.hbm_to_vmem [thread:$0]  %s16, 256, %s18, [#allocation3], 32, 32, 2
    $region5: #{tpu_custom_call.1} parent=1 // pred_fallthru
      _
    // Predicated region
    $region6: #{tpu_custom_call.1} parent=1 // pred_check
      _
    $region7: #{tpu_custom_call.1} parent=1 // pred_check_branch
      %25 = sbr.rel (0) target = $region9
    $region8: #{tpu_custom_call.1} parent=1 // pred_region
      %27 = vsyncadd [#allocation6], 0
      %s29 = sshll.u32 %s1, 4
      %s30 = int_to_ptr.hbm [resolvable:$true] %s29
      %s31 = sshll.u32 [#allocation5], 4
      %s32 = int_to_ptr.vmem [resolvable:$true] %s31
      %34 = dma.hbm_to_vmem [thread:$0]  %s30, 128, %s32, [#allocation6]
    $region9: #{tpu_custom_call.1} parent=1 // pred_fallthru
      _
    // Predicated region
    $region10: #{tpu_custom_call.1} parent=1 // pred_check
      _
    $region11: #{tpu_custom_call.1} parent=1 // pred_check_branch
      %36 = sbr.rel (0) target = $region13
    $region12: #{tpu_custom_call.1} parent=1 // pred_region
      %38 = vsyncadd [#allocation6], 0
      %s39 = sshll.u32 %s2, 4
      %s40 = int_to_ptr.hbm [resolvable:$true] %s39
      %s41 = sshll.u32 [#allocation7], 4
      %s42 = int_to_ptr.vmem [resolvable:$true] %s41
      %47 = dma.hbm_to_vmem [thread:$0]  %s40, 256, %s42, [#allocation6], 32, 32, 2
    $region13: #{tpu_custom_call.1} parent=1 // pred_fallthru
      _
    // Predicated region
    $region14: #{tpu_custom_call.1} parent=1 // pred_check
      _
    $region15: #{tpu_custom_call.1} parent=1 // pred_check_branch
      %49 = sbr.rel (0) target = $region17
    $region16: #{tpu_custom_call.1} parent=1 // pred_region
      %51 = dma.done [#allocation3], 256
    $region17: #{tpu_custom_call.1} parent=1 // pred_fallthru
      _
    // Predicated region
    $region18: #{tpu_custom_call.1} parent=1 // pred_check
      _
    $region19: #{tpu_custom_call.1} parent=1 // pred_check_branch
      %53 = sbr.rel (0) target = $region21
    $region20: #{tpu_custom_call.1} parent=1 // pred_region
      %55 = dma.done [#allocation6], 128
    $region21: #{tpu_custom_call.1} parent=1 // pred_fallthru
      _
    // Predicated region
    $region22: #{tpu_custom_call.1} parent=1 // pred_check
      _
    $region23: #{tpu_custom_call.1} parent=1 // pred_check_branch
      %57 = sbr.rel (0) target = $region25
    $region24: #{tpu_custom_call.1} parent=1 // pred_region
      %59 = dma.done [#allocation6], 256
    $region25: #{tpu_custom_call.1} parent=1 // pred_fallthru
      _
    %v60 = vld [vmem:[#allocation2] sm:$0x3]
    %v61 = vld [vmem:[#allocation2 + $0x2] sm:$0x3]
    %v62 = vld [vmem:[#allocation2 + $0x4] sm:$0x3]
    %v63 = vld [vmem:[#allocation2 + $0x6] sm:$0x3]
    %v64 = vld [vmem:[#allocation2 + $0x8] sm:$0x3]
    %v65 = vld [vmem:[#allocation2 + $0xa] sm:$0x3]
    %v66 = vld [vmem:[#allocation2 + $0xc] sm:$0x3]
    %v67 = vld [vmem:[#allocation2 + $0xe] sm:$0x3]
    %v68 = vld [vmem:[#allocation5] sm:$0xff]
    %v70 = vrot.slane %v68, 1
    %v71 = vrot.slane %v68, 2
    %v72 = vrot.slane %v68, 3
    %v73 = vrot.slane %v68, 4
    %v74 = vrot.slane %v68, 5
    %v75 = vrot.slane %v68, 6
    %v76 = vrot.slane %v68, 7
    %v77 = vperm.slane %v68, 0
    %v78 = vperm.slane %v70, 0
    %v79 = vperm.slane %v71, 0
    %v80 = vperm.slane %v72, 0
    %v81 = vperm.slane %v73, 0
    %v82 = vperm.slane %v74, 0
    %v83 = vperm.slane %v75, 0
    %v84 = vperm.slane %v76, 0
    %v93 = vadd.f32 %v60, %v77
    %v94 = vadd.f32 %v61, %v78
    %v95 = vadd.f32 %v62, %v79
    %v96 = vadd.f32 %v63, %v80
    %v97 = vadd.f32 %v64, %v81
    %v98 = vadd.f32 %v65, %v82
    %v99 = vadd.f32 %v66, %v83
    %v100 = vadd.f32 %v67, %v84
    %v101 = vld [vmem:[#allocation7] sm:$0x3]
    %v102 = vld [vmem:[#allocation7 + $0x2] sm:$0x3]
    %v103 = vld [vmem:[#allocation7 + $0x4] sm:$0x3]
    %v104 = vld [vmem:[#allocation7 + $0x6] sm:$0x3]
    %v105 = vld [vmem:[#allocation7 + $0x8] sm:$0x3]
    %v106 = vld [vmem:[#allocation7 + $0xa] sm:$0x3]
    %v107 = vld [vmem:[#allocation7 + $0xc] sm:$0x3]
    %v108 = vld [vmem:[#allocation7 + $0xe] sm:$0x3]
    %v109 = vadd.s32 %v101, 2147483648
    %vm111 = vcmp.ge.s32.totalorder %v109, 2576980378
    %v112 = vadd.s32 %v102, 2147483648
    %vm114 = vcmp.ge.s32.totalorder %v112, 2576980378
    %v115 = vadd.s32 %v103, 2147483648
    %vm117 = vcmp.ge.s32.totalorder %v115, 2576980378
    %v118 = vadd.s32 %v104, 2147483648
    %vm120 = vcmp.ge.s32.totalorder %v118, 2576980378
    %v121 = vadd.s32 %v105, 2147483648
    %vm123 = vcmp.ge.s32.totalorder %v121, 2576980378
    %v124 = vadd.s32 %v106, 2147483648
    %vm126 = vcmp.ge.s32.totalorder %v124, 2576980378
    %v127 = vadd.s32 %v107, 2147483648
    %vm129 = vcmp.ge.s32.totalorder %v127, 2576980378
    %v130 = vadd.s32 %v108, 2147483648
    %vm132 = vcmp.ge.s32.totalorder %v130, 2576980378
    %v133 = vmul.f32 %v93, 1.1111112
    %v134 = vmul.f32 %v94, 1.1111112
    %v135 = vmul.f32 %v95, 1.1111112
    %v136 = vmul.f32 %v96, 1.1111112
    %v137 = vmul.f32 %v97, 1.1111112
    %v138 = vmul.f32 %v98, 1.1111112
    %v139 = vmul.f32 %v99, 1.1111112
    %v140 = vmul.f32 %v100, 1.1111112
    %v141 = vsel %vm111, %v133, 0.0
    %v142 = vsel %vm114, %v134, 0.0
    %v143 = vsel %vm117, %v135, 0.0
    %v144 = vsel %vm120, %v136, 0.0
    %v145 = vsel %vm123, %v137, 0.0
    %v146 = vsel %vm126, %v138, 0.0
    %v147 = vsel %vm129, %v139, 0.0
    %v148 = vsel %vm132, %v140, 0.0
    %vm149 = vcmask 254976
    %150 = vst.msk [vmem:[#allocation8] sm:$0x3] %vm149, %v141
    %151 = vst.msk [vmem:[#allocation8 + $0x2] sm:$0x3] %vm149, %v142
    %152 = vst.msk [vmem:[#allocation8 + $0x4] sm:$0x3] %vm149, %v143
    %153 = vst.msk [vmem:[#allocation8 + $0x6] sm:$0x3] %vm149, %v144
    %154 = vst.msk [vmem:[#allocation8 + $0x8] sm:$0x3] %vm149, %v145
    %155 = vst.msk [vmem:[#allocation8 + $0xa] sm:$0x3] %vm149, %v146
    %156 = vst.msk [vmem:[#allocation8 + $0xc] sm:$0x3] %vm149, %v147
    %157 = vst.msk [vmem:[#allocation8 + $0xe] sm:$0x3] %vm149, %v148
    // Predicated region
    $region26: #{tpu_custom_call.1} parent=1 // pred_check
      _
    $region27: #{tpu_custom_call.1} parent=1 // pred_check_branch
      %159 = sbr.rel (0) target = $region29
    $region28: #{tpu_custom_call.1} parent=1 // pred_region
      %161 = vsyncadd [#allocation4], 0
      %s162 = sshll.u32 [#allocation8], 4
      %s163 = int_to_ptr.vmem [resolvable:$true] %s162
      %s164 = sshll.u32 %s3, 4
      %s165 = int_to_ptr.hbm [resolvable:$true] %s164
      %170 = dma.vmem_to_hbm [thread:$0]  %s163, 256, %s165, [#allocation4], 32, 32, 2
    $region29: #{tpu_custom_call.1} parent=1 // pred_fallthru
      _
    // Predicated region
    $region30: #{tpu_custom_call.1} parent=1 // pred_check
      _
    $region31: #{tpu_custom_call.1} parent=1 // pred_check_branch
      %172 = sbr.rel (0) target = $region33
    $region32: #{tpu_custom_call.1} parent=1 // pred_region
      %174 = dma.done [#allocation4], 256
    $region33: #{tpu_custom_call.1} parent=1 // pred_fallthru
      _
    %175 = vsyncpa [#allocation3], 1
    %176 = vsyncpa [#allocation6], 1
    %177 = vsyncpa [#allocation4], 1

</llo_original>
